<compile_context>
chip_gen: v7x
topology: tpu7x:2x2x1
jax: 0.10.0
libtpu: 0.0.40
codegen_flags: <defaults>
</compile_context>

<pallas_src>
import jax
import jax.numpy as jnp
from jax.experimental import pallas as pl
from jax.experimental.pallas import tpu as pltpu


def _round_up(x, m):
    return (x + m - 1) // m * m


# ---------------------------------------------------------------------------
# Fused kernel: small-field one-hot gather (pre-fused table) + pre-gathered
# uid rows -> +bias -> ReLU -> combine FC -> tanh.  One (TB, *) batch tile.
# ---------------------------------------------------------------------------
def _encoder_user_kernel(uid_rows_ref, sidx_ref, stable_ref, b1_ref,
                         w2_ref, b2_ref, out_ref):
    tb = sidx_ref.shape[0]
    vs_pad = stable_ref.shape[0]

    # sidx_ref: (TB, 3) int32 indices into the packed gender|age|job table.
    sidx = sidx_ref[...]
    iota = jax.lax.broadcasted_iota(jnp.int32, (tb, vs_pad), 1)
    hot = ((iota == sidx[:, 0:1]) |
           (iota == sidx[:, 1:2]) |
           (iota == sidx[:, 2:3]))
    multi_hot = hot.astype(jnp.bfloat16)

    # (TB, vs_pad) @ (vs_pad, hid_pad): exact bf16 row selection of the
    # pre-fused (embedding @ fc_weight) small-field table, accumulated in f32.
    h = jnp.dot(multi_hot, stable_ref[...], preferred_element_type=jnp.float32)

    # Add the XLA-gathered, pre-fused uid contribution (occupies a disjoint
    # column band) and the concatenated per-field biases; ReLU in f32.
    h = h + uid_rows_ref[...].astype(jnp.float32) + b1_ref[...]
    h = jnp.maximum(h, 0.0)
    # TODO(synk): nn.Dropout(0.5) is identity in eval mode; no PRNG mask applied.

    # Combine FC (lane-dense padded output) + tanh.
    y = jnp.dot(h.astype(jnp.bfloat16), w2_ref[...],
                preferred_element_type=jnp.float32) + b2_ref[...]
    out_ref[...] = jnp.tanh(y).astype(out_ref.dtype)


# ---------------------------------------------------------------------------
# Wrapper
# ---------------------------------------------------------------------------
def encoder_user_forward(indices, packed, *, max_tile=1024,
                         out_dtype=jnp.float32, trim=True):
    """indices: dict of int32 arrays of shape (B, 1); packed: pack_params().

    out_dtype=jnp.bfloat16 halves the output HBM write; trim=False returns the
    padded (b_pad, out_pad) slab and skips the wrapper-side slice copy.
    """
    d = packed["dims"]

    uid = indices["uid"][:, 0].astype(jnp.int32)
    gen = indices["gender"][:, 0].astype(jnp.int32)
    age = indices["age"][:, 0].astype(jnp.int32)
    job = indices["job"][:, 0].astype(jnp.int32)
    B = uid.shape[0]

    # uid contribution: real (XLA) gather of pre-fused bf16 rows -> (B, hid_pad).
    uid_rows = jnp.take(packed["uid_table_fc"], uid, axis=0)

    # Small-field indices offset into the packed gender|age|job table.
    soff = packed["small_offsets"]
    sidx = jnp.stack([gen + soff[0], age + soff[1], job + soff[2]], axis=1)

    # Batch tile: multiple of 16 rows (bf16 sublane packing); ~ceil(B/2) so that
    # large batches always produce >= 2 grid steps (v7x megacore), capped so big
    # batches amortize per-step overhead without blowing VMEM.
    max_tile = _round_up(max_tile, 16)
    tb = min(max_tile, _round_up(pl.cdiv(B, 2), 16))
    b_pad = _round_up(B, tb)
    if b_pad != B:
        uid_rows = jnp.pad(uid_rows, ((0, b_pad - B), (0, 0)))
        sidx = jnp.pad(sidx, ((0, b_pad - B), (0, 0)))  # pad rows -> index 0 (valid)

    grid = (b_pad // tb,)
    out = pl.pallas_call(
        _encoder_user_kernel,
        out_shape=jax.ShapeDtypeStruct((b_pad, d["out_pad"]), out_dtype),
        grid=grid,
        in_specs=[
            pl.BlockSpec((tb, d["hid_pad"]), lambda i: (i, 0)),            # uid rows
            pl.BlockSpec((tb, 3), lambda i: (i, 0)),                       # small idx
            pl.BlockSpec((d["vs_pad"], d["hid_pad"]), lambda i: (0, 0)),   # small table
            pl.BlockSpec((1, d["hid_pad"]), lambda i: (0, 0)),             # b1
            pl.BlockSpec((d["hid_pad"], d["out_pad"]), lambda i: (0, 0)),  # w2
            pl.BlockSpec((1, d["out_pad"]), lambda i: (0, 0)),             # b2
        ],
        out_specs=pl.BlockSpec((tb, d["out_pad"]), lambda i: (i, 0)),
        compiler_params=pltpu.CompilerParams(
            dimension_semantics=("parallel",),
            vmem_limit_bytes=32 * 1024 * 1024,
        ),
    )(uid_rows, sidx, packed["stable"], packed["b1"], packed["w2"],
      packed["b2"])

    if trim:
        # PyTorch output is (B, 200) after squeeze(1); drop batch/lane padding.
        out = out[:B, :d["out_dim"]]
    return out


# ---------------------------------------------------------------------------
# Parameter construction / packing
# ---------------------------------------------------------------------------
def init_params(key, *, uid_max, gender_max, age_max, job_max, embed_com):
    """Deterministic synthetic parameter init (shapes match nn.Module.__init__)."""
    ks = jax.random.split(key, 14)
    e = embed_com
    h = embed_com // 2

    def lin(kw, kb, fan_in, fan_out):
        # store W as (in, out) == torch weight.T ; small uniform init
        bound = 1.0 / jnp.sqrt(fan_in)
        w = jax.random.uniform(kw, (fan_in, fan_out), jnp.float32, -bound, bound)
        b = jax.random.uniform(kb, (1, fan_out), jnp.float32, -bound, bound)
        return w, b

    params = {}
    params["uid_embedding"] = jax.random.normal(ks[0], (uid_max, e), jnp.float32)
    params["gender_embedding"] = jax.random.normal(ks[1], (gender_max, h), jnp.float32)
    params["age_embedding"] = jax.random.normal(ks[2], (age_max, h), jnp.float32)
    params["job_embedding"] = jax.random.normal(ks[3], (job_max, h), jnp.float32)
    params["uid_fc_w"], params["uid_fc_b"] = lin(ks[4], ks[5], e, e)
    params["gender_fc_w"], params["gender_fc_b"] = lin(ks[6], ks[7], h, e)
    params["age_fc_w"], params["age_fc_b"] = lin(ks[8], ks[9], h, e)
    params["job_fc_w"], params["job_fc_b"] = lin(ks[10], ks[11], h, e)
    params["combine_fc_w"], params["combine_fc_b"] = lin(ks[12], ks[13], 4 * e, 200)
    return params


def pack_params(params, *, uid_max, gender_max, age_max, job_max, embed_com):
    """Pack module params into the fused/padded kernel layout (done once).

    Per-field FC weights are pre-multiplied into the embedding tables in f32,
    then cast to bf16 (gather -> FC is linear; ReLU comes after).
    NOTE: input indices are assumed in-range; out-of-range indices are not
    validated and would silently select a wrong/zero row.
    """
    E = embed_com
    hid = 4 * E
    hid_pad = _round_up(hid, 128)
    out_dim = params["combine_fc_b"].shape[-1]
    out_pad = _round_up(out_dim, 128)
    f32 = jnp.float32

    # Pre-fused per-field tables (f32 product, bf16 storage).
    uid_fc = params["uid_embedding"] @ params["uid_fc_w"]           # (uid_max, E)
    gender_fc = params["gender_embedding"] @ params["gender_fc_w"]  # (gender_max, E)
    age_fc = params["age_embedding"] @ params["age_fc_w"]
    job_fc = params["job_embedding"] @ params["job_fc_w"]

    # uid table laid out directly in the hid_pad column space (band [0:E]);
    # gathered on the XLA side, so row count needs no TPU tiling padding.
    uid_table_fc = jnp.zeros((uid_max, hid_pad), f32).at[:, 0:E].set(uid_fc)

    # Small combined table (gender|age|job), rows padded to a multiple of 16
    # (bf16 sublane packing), each field in its own hid column band.
    vs = gender_max + age_max + job_max
    vs_pad = _round_up(vs, 16)
    stable = jnp.zeros((vs_pad, hid_pad), f32)
    r = 0
    stable = stable.at[r:r + gender_max, E:2 * E].set(gender_fc)
    r += gender_max
    stable = stable.at[r:r + age_max, 2 * E:3 * E].set(age_fc)
    r += age_max
    stable = stable.at[r:r + job_max, 3 * E:4 * E].set(job_fc)

    b1 = jnp.zeros((1, hid_pad), f32).at[:, 0:hid].set(jnp.concatenate(
        [params["uid_fc_b"], params["gender_fc_b"],
         params["age_fc_b"], params["job_fc_b"]], axis=-1))

    # Combine FC padded to lane-dense output columns (tanh(0)=0 padding sliced
    # off in the wrapper).
    w2 = jnp.zeros((hid_pad, out_pad), f32).at[0:hid, 0:out_dim].set(
        params["combine_fc_w"])
    b2 = jnp.zeros((1, out_pad), f32).at[:, 0:out_dim].set(params["combine_fc_b"])

    return {
        "uid_table_fc": uid_table_fc.astype(jnp.bfloat16),
        "stable": stable.astype(jnp.bfloat16),
        "b1": b1,
        "w2": w2.astype(jnp.bfloat16),
        "b2": b2,
        "small_offsets": (0, gender_max, gender_max + age_max),
        "dims": dict(hid_pad=hid_pad, out_pad=out_pad, out_dim=out_dim,
                     vs_pad=vs_pad, hid=hid, E=E),
    }


# ---------------------------------------------------------------------------
# References
# ---------------------------------------------------------------------------
def reference_forward(indices, params):
    """Pure-JAX f32 reference (mirrors the PyTorch forward in eval mode)."""
    e_uid = params["uid_embedding"][indices["uid"][:, 0]]
    e_gen = params["gender_embedding"][indices["gender"][:, 0]]
    e_age = params["age_embedding"][indices["age"][:, 0]]
    e_job = params["job_embedding"][indices["job"][:, 0]]
    x_uid = e_uid @ params["uid_fc_w"] + params["uid_fc_b"]
    x_gen = e_gen @ params["gender_fc_w"] + params["gender_fc_b"]
    x_age = e_age @ params["age_fc_w"] + params["age_fc_b"]
    x_job = e_job @ params["job_fc_w"] + params["job_fc_b"]
    x = jnp.concatenate([x_uid, x_gen, x_age, x_job], axis=-1)
    x = jnp.maximum(x, 0.0)
    return jnp.tanh(x @ params["combine_fc_w"] + params["combine_fc_b"])


def reference_forward_fused_bf16(indices, params):
    """Reference mimicking the kernel's pre-fused-table bf16 rounding path."""
    bf, f32 = jnp.bfloat16, jnp.float32
    uid_c = (params["uid_embedding"] @ params["uid_fc_w"]).astype(bf)[
        indices["uid"][:, 0]].astype(f32)
    gen_c = (params["gender_embedding"] @ params["gender_fc_w"]).astype(bf)[
        indices["gender"][:, 0]].astype(f32)
    age_c = (params["age_embedding"] @ params["age_fc_w"]).astype(bf)[
        indices["age"][:, 0]].astype(f32)
    job_c = (params["job_embedding"] @ params["job_fc_w"]).astype(bf)[
        indices["job"][:, 0]].astype(f32)
    x = jnp.concatenate([uid_c, gen_c, age_c, job_c], axis=-1)
    x = x + jnp.concatenate(
        [params["uid_fc_b"], params["gender_fc_b"],
         params["age_fc_b"], params["job_fc_b"]], axis=-1)
    x = jnp.maximum(x, 0.0)
    y = jnp.dot(x.astype(bf), params["combine_fc_w"].astype(bf),
                preferred_element_type=f32) + params["combine_fc_b"]
    return jnp.tanh(y)


if __name__ == "__main__":
    # small config consistent with the module
    uid_max, gender_max, age_max, job_max = 16, 2, 7, 21
    embed_com = 32
    batch = 8

    key = jax.random.PRNGKey(0)
    k_param, k_uid, k_gen, k_age, k_job = jax.random.split(key, 5)
    params = init_params(k_param, uid_max=uid_max, gender_max=gender_max,
                         age_max=age_max, job_max=job_max, embed_com=embed_com)
    packed = pack_params(params, uid_max=uid_max, gender_max=gender_max,
                         age_max=age_max, job_max=job_max, embed_com=embed_com)

    indices = {
        "uid": jax.random.randint(k_uid, (batch, 1), 0, uid_max, jnp.int32),
        "gender": jax.random.randint(k_gen, (batch, 1), 0, gender_max, jnp.int32),
        "age": jax.random.randint(k_age, (batch, 1), 0, age_max, jnp.int32),
        "job": jax.random.randint(k_job, (batch, 1), 0, job_max, jnp.int32),
    }

    out = encoder_user_forward(indices, packed)
    out = jax.block_until_ready(out)

    ref_bf = reference_forward_fused_bf16(indices, params)
    ref_f32 = reference_forward(indices, params)

    assert out.shape == (batch, 200), out.shape
    # Exact-path check vs. a reference using the same pre-fused bf16 rounding.
    assert jnp.allclose(out, ref_bf, atol=2e-3, rtol=2e-3), \
        float(jnp.max(jnp.abs(out - ref_bf)))
    # Sanity check vs. the pure-f32 module semantics (bf16 operand tolerance).
    assert jnp.allclose(out, ref_f32, atol=6e-2, rtol=0.0), \
        float(jnp.max(jnp.abs(out - ref_f32)))
    print("KERNEL_OK")
</pallas_src>

<mosaic_0001>
module attributes {stable_mosaic.version = 11 : i64} {
  func.func @_encoder_user_kernel(%arg0: i32, %arg1: memref<16x128xbf16, #tpu.memory_space<vmem>>, %arg2: memref<16x3xi32, #tpu.memory_space<vmem>>, %arg3: memref<32x128xbf16, #tpu.memory_space<vmem>>, %arg4: memref<1x128xf32, #tpu.memory_space<vmem>>, %arg5: memref<128x256xbf16, #tpu.memory_space<vmem>>, %arg6: memref<1x256xf32, #tpu.memory_space<vmem>>, %arg7: memref<16x256xf32, #tpu.memory_space<vmem>>) attributes {dimension_semantics = [#tpu.dimension_semantics<parallel>], iteration_bounds = array<i64: 1>, scalar_prefetch = 0 : i64, scratch_operands = 0 : i64, tpu.core_type = #tpu.core_type<tc>, window_params = [{transform_indices = @transform_0, window_bounds = array<i64: 16, 128>}, {transform_indices = @transform_1, window_bounds = array<i64: 16, 3>}, {pipeline_mode = #tpu.pipeline_mode<synchronous>, transform_indices = @transform_2, window_bounds = array<i64: 32, 128>}, {pipeline_mode = #tpu.pipeline_mode<synchronous>, transform_indices = @transform_3, window_bounds = array<i64: 1, 128>}, {pipeline_mode = #tpu.pipeline_mode<synchronous>, transform_indices = @transform_4, window_bounds = array<i64: 128, 256>}, {pipeline_mode = #tpu.pipeline_mode<synchronous>, transform_indices = @transform_5, window_bounds = array<i64: 1, 256>}, {transform_indices = @transform_6, window_bounds = array<i64: 16, 256>}]} {
    %c0 = arith.constant 0 : index
    %c0_0 = arith.constant 0 : index
    %0 = vector.load %arg2[%c0, %c0_0] : memref<16x3xi32, #tpu.memory_space<vmem>>, vector<16x3xi32>
    %1 = tpu.iota {dimensions = array<i32: 1>} : vector<16x32xi32>
    %2 = vector.extract_strided_slice %0 {offsets = [0, 0], sizes = [16, 1], strides = [1, 1]} : vector<16x3xi32> to vector<16x1xi32>
    %3 = vector.broadcast %2 : vector<16x1xi32> to vector<16x32xi32>
    %4 = arith.cmpi eq, %1, %3 : vector<16x32xi32>
    %5 = vector.extract_strided_slice %0 {offsets = [0, 1], sizes = [16, 1], strides = [1, 1]} : vector<16x3xi32> to vector<16x1xi32>
    %6 = vector.broadcast %5 : vector<16x1xi32> to vector<16x32xi32>
    %7 = arith.cmpi eq, %1, %6 : vector<16x32xi32>
    %8 = arith.ori %4, %7 : vector<16x32xi1>
    %9 = vector.extract_strided_slice %0 {offsets = [0, 2], sizes = [16, 1], strides = [1, 1]} : vector<16x3xi32> to vector<16x1xi32>
    %10 = vector.broadcast %9 : vector<16x1xi32> to vector<16x32xi32>
    %11 = arith.cmpi eq, %1, %10 : vector<16x32xi32>
    %12 = arith.ori %8, %11 : vector<16x32xi1>
    %13 = arith.extui %12 : vector<16x32xi1> to vector<16x32xi32>
    %14 = arith.sitofp %13 : vector<16x32xi32> to vector<16x32xf32>
    %15 = arith.truncf %14 : vector<16x32xf32> to vector<16x32xbf16>
    %c0_1 = arith.constant 0 : index
    %c0_2 = arith.constant 0 : index
    %16 = vector.load %arg3[%c0_1, %c0_2] : memref<32x128xbf16, #tpu.memory_space<vmem>>, vector<32x128xbf16>
    %cst = arith.constant dense<0.000000e+00> : vector<16x128xf32>
    %17 = tpu.matmul %15, %16, %cst {dimension_numbers = #tpu.dot_dimension_numbers<[1], [0], [0], [1], [0, 0, 1, 1], [], []>} : vector<16x32xbf16>, vector<32x128xbf16>, vector<16x128xf32> -> vector<16x128xf32>
    %c0_3 = arith.constant 0 : index
    %c0_4 = arith.constant 0 : index
    %18 = vector.load %arg1[%c0_3, %c0_4] : memref<16x128xbf16, #tpu.memory_space<vmem>>, vector<16x128xbf16>
    %19 = arith.extf %18 : vector<16x128xbf16> to vector<16x128xf32>
    %20 = arith.addf %17, %19 : vector<16x128xf32>
    %c0_5 = arith.constant 0 : index
    %c0_6 = arith.constant 0 : index
    %21 = vector.load %arg4[%c0_5, %c0_6] : memref<1x128xf32, #tpu.memory_space<vmem>>, vector<1x128xf32>
    %22 = vector.broadcast %21 : vector<1x128xf32> to vector<16x128xf32>
    %23 = arith.addf %20, %22 : vector<16x128xf32>
    %cst_7 = arith.constant 0.000000e+00 : f32
    %24 = vector.broadcast %cst_7 : f32 to vector<16x128xf32>
    %25 = arith.maximumf %23, %24 : vector<16x128xf32>
    %26 = arith.truncf %25 : vector<16x128xf32> to vector<16x128xbf16>
    %c0_8 = arith.constant 0 : index
    %c0_9 = arith.constant 0 : index
    %27 = vector.load %arg5[%c0_8, %c0_9] : memref<128x256xbf16, #tpu.memory_space<vmem>>, vector<128x256xbf16>
    %cst_10 = arith.constant dense<0.000000e+00> : vector<16x256xf32>
    %28 = tpu.matmul %26, %27, %cst_10 {dimension_numbers = #tpu.dot_dimension_numbers<[1], [0], [0], [1], [0, 0, 1, 1], [], []>} : vector<16x128xbf16>, vector<128x256xbf16>, vector<16x256xf32> -> vector<16x256xf32>
    %c0_11 = arith.constant 0 : index
    %c0_12 = arith.constant 0 : index
    %29 = vector.load %arg6[%c0_11, %c0_12] : memref<1x256xf32, #tpu.memory_space<vmem>>, vector<1x256xf32>
    %30 = vector.broadcast %29 : vector<1x256xf32> to vector<16x256xf32>
    %31 = arith.addf %28, %30 : vector<16x256xf32>
    %32 = math.tanh %31 : vector<16x256xf32>
    %c0_13 = arith.constant 0 : index
    %c0_14 = arith.constant 0 : index
    %33 = vector.load %arg7[%c0_13, %c0_14] : memref<16x256xf32, #tpu.memory_space<vmem>>, vector<16x256xf32>
    tpu.vector_store %arg7[%c0_13, %c0_14], %32 {strides = array<i32>} : memref<16x256xf32, #tpu.memory_space<vmem>>, vector<16x256xf32>,
    return
  }
  func.func @transform_0(%arg0: i32) -> (i32, i32) {
    %c0_i32 = arith.constant 0 : i32
    %c0_i32_0 = arith.constant 0 : i32
    return %arg0, %c0_i32 : i32, i32
  }
  func.func @transform_1(%arg0: i32) -> (i32, i32) {
    %c0_i32 = arith.constant 0 : i32
    %c0_i32_0 = arith.constant 0 : i32
    return %arg0, %c0_i32 : i32, i32
  }
  func.func @transform_2(%arg0: i32) -> (i32, i32) {
    %c0_i32 = arith.constant 0 : i32
    %c0_i32_0 = arith.constant 0 : i32
    %c0_i32_1 = arith.constant 0 : i32
    return %c0_i32, %c0_i32_0 : i32, i32
  }
  func.func @transform_3(%arg0: i32) -> (i32, i32) {
    %c0_i32 = arith.constant 0 : i32
    %c0_i32_0 = arith.constant 0 : i32
    %c0_i32_1 = arith.constant 0 : i32
    return %c0_i32, %c0_i32_0 : i32, i32
  }
  func.func @transform_4(%arg0: i32) -> (i32, i32) {
    %c0_i32 = arith.constant 0 : i32
    %c0_i32_0 = arith.constant 0 : i32
    %c0_i32_1 = arith.constant 0 : i32
    return %c0_i32, %c0_i32_0 : i32, i32
  }
  func.func @transform_5(%arg0: i32) -> (i32, i32) {
    %c0_i32 = arith.constant 0 : i32
    %c0_i32_0 = arith.constant 0 : i32
    %c0_i32_1 = arith.constant 0 : i32
    return %c0_i32, %c0_i32_0 : i32, i32
  }
  func.func @transform_6(%arg0: i32) -> (i32, i32) {
    %c0_i32 = arith.constant 0 : i32
    %c0_i32_0 = arith.constant 0 : i32
    return %arg0, %c0_i32 : i32, i32
  }
}

</mosaic_0001>

<llo_original>
// kernel: tpu_custom_call.1
$region0: #{tpu_custom_call.1}
  #allocation0 [shape = 'u32[]', space=smem, size = 0x4, offset = 0x4, fixed_abs, tag = 'smem constant byte address 0x4 - core index']
  #allocation1 [shape = 'u32[144,128]{1,0:T(1,128)}', space=vmem, size = 0x12000, scoped, tag = 'internal scratch']
  %s0 = inlined_call_operand.vmem [shape: bf16[16,128], index: 0, kind: input, shape index: {}]
  %s1 = inlined_call_operand.vmem [shape: s32[16,3], index: 1, kind: input, shape index: {}]
  %s2 = inlined_call_operand.vmem [shape: bf16[32,128], index: 2, kind: input, shape index: {}]
  %s3 = inlined_call_operand.vmem [shape: f32[1,128], index: 3, kind: input, shape index: {}]
  %s4 = inlined_call_operand.hbm [shape: bf16[128,256], index: 4, kind: input, shape index: {}]
  %s5 = inlined_call_operand.vmem [shape: f32[1,256], index: 5, kind: input, shape index: {}]
  %s6 = inlined_call_operand.hbm [shape: f32[16,256], index: 6, kind: output, shape index: {}]
  %s7 = sld [smem:[#allocation0]]
  $region38: #{tpu_custom_call.1} parent=0
    _
  %s9 = ssub.s32 1, %s7
  %s10 = scalar_select 0, %s9, %s7
  $region1: #{tpu_custom_call.1} parent=0
    #allocation2 [shape = 'u8[65536]{0}', space=vmem, size = 0x10000, scoped, tag = 'input window, operand 4, single buffered']
    #allocation3 [shape = 's32[1]{0}', space=sflag, size = 0x4, scoped, tag = 'scoped memory for tpu_custom_call.1']
    #allocation4 [shape = 's32[1]{0}', space=sflag, size = 0x4, scoped, tag = 'scoped memory for tpu_custom_call.1']
    #allocation5 [shape = 'u8[16384]{0}', space=vmem, size = 0x4000, scoped, tag = 'output window, operand 0, single buffered']
    %11 = vsyncpa [#allocation3], 0
    %12 = vsyncpa [#allocation4], 0
    // Predicated region
    $region2: #{tpu_custom_call.1} parent=1 // pred_check
      _
    $region3: #{tpu_custom_call.1} parent=1 // pred_check_branch
      %14 = sbr.rel (0) target = $region5
    $region4: #{tpu_custom_call.1} parent=1 // pred_region
      _
    $region5: #{tpu_custom_call.1} parent=1 // pred_fallthru
      _
    // Predicated region
    $region6: #{tpu_custom_call.1} parent=1 // pred_check
      _
    $region7: #{tpu_custom_call.1} parent=1 // pred_check_branch
      %16 = sbr.rel (0) target = $region9
    $region8: #{tpu_custom_call.1} parent=1 // pred_region
      _
    $region9: #{tpu_custom_call.1} parent=1 // pred_fallthru
      _
    // Predicated region
    $region10: #{tpu_custom_call.1} parent=1 // pred_check
      _
    $region11: #{tpu_custom_call.1} parent=1 // pred_check_branch
      %18 = sbr.rel (0) target = $region13
    $region12: #{tpu_custom_call.1} parent=1 // pred_region
      _
    $region13: #{tpu_custom_call.1} parent=1 // pred_fallthru
      _
    // Predicated region
    $region14: #{tpu_custom_call.1} parent=1 // pred_check
      _
    $region15: #{tpu_custom_call.1} parent=1 // pred_check_branch
      %20 = sbr.rel (0) target = $region17
    $region16: #{tpu_custom_call.1} parent=1 // pred_region
      _
    $region17: #{tpu_custom_call.1} parent=1 // pred_fallthru
      _
    // Predicated region
    $region18: #{tpu_custom_call.1} parent=1 // pred_check
      _
    $region19: #{tpu_custom_call.1} parent=1 // pred_check_branch
      %22 = sbr.rel (0) target = $region21
    $region20: #{tpu_custom_call.1} parent=1 // pred_region
      %s24 = ssub.s32 2048, 2048
      %25 = vsyncadd [#allocation3], %s24
      %s26 = sshll.u32 [#allocation2], 4
      %s27 = int_to_ptr.vmem [resolvable:$true] %s26
      %32 = dma.hbm_to_vmem [thread:$0]  %s4, 2048, %s27, [#allocation3], 128, 128, 8
    $region21: #{tpu_custom_call.1} parent=1 // pred_fallthru
      _
    // Predicated region
    $region22: #{tpu_custom_call.1} parent=1 // pred_check
      _
    $region23: #{tpu_custom_call.1} parent=1 // pred_check_branch
      %34 = sbr.rel (0) target = $region25
    $region24: #{tpu_custom_call.1} parent=1 // pred_region
      _
    $region25: #{tpu_custom_call.1} parent=1 // pred_fallthru
      _
    // Predicated region
    $region26: #{tpu_custom_call.1} parent=1 // pred_check
      _
    $region27: #{tpu_custom_call.1} parent=1 // pred_check_branch
      %36 = sbr.rel (0) target = $region29
    $region28: #{tpu_custom_call.1} parent=1 // pred_region
      %37 = dma.done [#allocation3], 2048
    $region29: #{tpu_custom_call.1} parent=1 // pred_fallthru
      _
    %v39 = vld [vmem:[%s1] sm:$0xff]
    %v40 = vld [vmem:[%s1 + $0x8] sm:$0xff]
    %v41 = vlaneseq
    %v42 = vand.u32 %v41, 127
    %43 = vset.pattern.permute.xlu0 0
    %44 = vperm.xlu0 %43, %v39
    %v45 = vpop.permute.xlu0 %44
    %46 = vset.pattern.permute.xlu0 0
    %47 = vperm.xlu0 %46, %v40
    %v48 = vpop.permute.xlu0 %47
    %vm49 = vcmp.eq.s32.totalorder %v42, %v45
    %vm50 = vcmp.eq.s32.totalorder %v42, %v48
    %51 = vset.pattern.permute.xlu0 1
    %52 = vperm.xlu0 %51, %v39
    %v53 = vpop.permute.xlu0 %52
    %54 = vset.pattern.permute.xlu0 1
    %55 = vperm.xlu0 %54, %v40
    %v56 = vpop.permute.xlu0 %55
    %vm57 = vcmp.eq.s32.totalorder %v42, %v53
    %vm58 = vcmp.eq.s32.totalorder %v42, %v56
    %vm59 = vmor %vm49, %vm57
    %vm60 = vmor %vm50, %vm58
    %61 = vset.pattern.permute.xlu0 2
    %62 = vperm.xlu0 %61, %v39
    %v63 = vpop.permute.xlu0 %62
    %64 = vset.pattern.permute.xlu0 2
    %65 = vperm.xlu0 %64, %v40
    %v66 = vpop.permute.xlu0 %65
    %vm67 = vcmp.eq.s32.totalorder %v42, %v63
    %vm68 = vcmp.eq.s32.totalorder %v42, %v66
    %vm69 = vmor %vm59, %vm67
    %vm70 = vmor %vm60, %vm68
    %v71 = vsel %vm69, 1, 0
    %v72 = vsel %vm70, 1, 0
    %v73 = vcvt.s32.f32 %v71
    %v74 = vcvt.s32.f32 %v72
    %v75 = vpack.c.bf16 %v74, %v73
    %v76 = vld [vmem:[%s2] sm:$0xf]
    %v77 = vld [vmem:[%s2 + $0x4] sm:$0xf]
    %v78 = vld [vmem:[%s2 + $0x8] sm:$0xf]
    %v79 = vld [vmem:[%s2 + $0xc] sm:$0xf]
    %v80 = vld [vmem:[%s0] sm:$0xf]
    %v81 = vld [vmem:[%s0 + $0x4] sm:$0xf]
    %v82 = vunpack.c.l.bf16 %v80
    %v83 = vunpack.c.l.bf16 %v81
    %v88 = vunpack.c.l.b16 %v76
    %v89 = vunpack.c.l.b16 %v77
    %v90 = vunpack.c.l.b16 %v78
    %v91 = vunpack.c.l.b16 %v79
    %v92 = vpack.c.b16 %v89, %v88
    %v93 = vpack.c.b16 %v91, %v90
    %vm96 = vcmask 261120
    %v98 = vsel %vm96, %v75, 0
    %100 = vmatprep.subr.bf16.mxu0 0
    %101 = vmatpush1.bf16.msra.mxu0 %v92
    %102 = vmatprep.subr.bf16.mxu0 0
    %103 = vmatpush1.bf16.msra.mxu0 %v93
    %104 = vmatprep.subr.bf16.mxu0 0
    %105 = vmatpush1.bf16.msra.mxu0 0
    %106 = vmatprep.subr.bf16.mxu0 0
    %107 = vmatpush1.bf16.msra.mxu0 0
    %108 = vmatprep.subr.bf16.mxu0 0
    %109 = vmatpush1.bf16.msra.mxu0 0
    %110 = vmatprep.subr.bf16.mxu0 0
    %111 = vmatpush1.bf16.msra.mxu0 0
    %112 = vmatprep.subr.bf16.mxu0 0
    %113 = vmatpush1.bf16.msra.mxu0 0
    %114 = vmatprep.subr.bf16.mxu0 0
    %115 = vmatpush1.bf16.msra.mxu0 0
    %116 = vmatprep.subr.bf16.mxu0 0
    %117 = vmatpush1.bf16.msra.mxu0 0
    %118 = vmatprep.subr.bf16.mxu0 0
    %119 = vmatpush1.bf16.msra.mxu0 0
    %120 = vmatprep.subr.bf16.mxu0 0
    %121 = vmatpush1.bf16.msra.mxu0 0
    %122 = vmatprep.subr.bf16.mxu0 0
    %123 = vmatpush1.bf16.msra.mxu0 0
    %124 = vmatprep.subr.bf16.mxu0 0
    %125 = vmatpush1.bf16.msra.mxu0 0
    %126 = vmatprep.subr.bf16.mxu0 0
    %127 = vmatpush1.bf16.msra.mxu0 0
    %128 = vmatprep.subr.bf16.mxu0 0
    %129 = vmatpush1.bf16.msra.mxu0 0
    %130 = vmatprep.subr.bf16.mxu0 0
    %131 = vmatpush1.bf16.msra.mxu0 0
    %132 = vmatprep.mubr.bf16.mxu0 0
    %133 = vmatmul.mubr.bf16.gmra.mrb[0].mxu0 %v98
    %v134 = vpop.f32.mrb[0].mxu0
    %v135 = vadd.f32 %v82, %v134
    %v136 = vpop.f32.mrb[0].mxu0
    %v137 = vpop.f32.mrb[0].mxu0
    %v138 = vadd.f32 %v83, %v137
    %v139 = vpop.f32.mrb[0].mxu0
    %140 = vdwg.mxu0
    %v141 = vld [vmem:[%s3] sm:$0x1]
    %v143 = vlaneseq
    %v144 = vshrl.u32 %v143, 7
    %v145 = vsub.s32 0, %v144
    %v146 = vrot.slane %v141, %v145
    %v148 = vadd.f32 %v135, %v146
    %v149 = vadd.f32 %v138, %v146
    %v150 = vmax.f32 %v148, 0.0
    %v151 = vmax.f32 %v149, 0.0
    %v152 = vpack.c.bf16 %v151, %v150
    %v153 = vld [vmem:[#allocation2] sm:$0xff]
    %v154 = vld [vmem:[#allocation2 + $0x8] sm:$0xff]
    %v155 = vld [vmem:[#allocation2 + $0x10] sm:$0xff]
    %v156 = vld [vmem:[#allocation2 + $0x18] sm:$0xff]
    %v157 = vld [vmem:[#allocation2 + $0x20] sm:$0xff]
    %v158 = vld [vmem:[#allocation2 + $0x28] sm:$0xff]
    %v159 = vld [vmem:[#allocation2 + $0x30] sm:$0xff]
    %v160 = vld [vmem:[#allocation2 + $0x38] sm:$0xff]
    %v161 = vld [vmem:[#allocation2 + $0x40] sm:$0xff]
    %v162 = vld [vmem:[#allocation2 + $0x48] sm:$0xff]
    %v163 = vld [vmem:[#allocation2 + $0x50] sm:$0xff]
    %v164 = vld [vmem:[#allocation2 + $0x58] sm:$0xff]
    %v165 = vld [vmem:[#allocation2 + $0x60] sm:$0xff]
    %v166 = vld [vmem:[#allocation2 + $0x68] sm:$0xff]
    %v167 = vld [vmem:[#allocation2 + $0x70] sm:$0xff]
    %v168 = vld [vmem:[#allocation2 + $0x78] sm:$0xff]
    %v169 = vld [vmem:[%s5] sm:$0x3]
    %v171 = vlaneseq
    %v172 = vshrl.u32 %v171, 7
    %v173 = vsub.s32 0, %v172
    %v174 = vrot.slane %v169, %v173
    %v175 = vlaneseq
    %v176 = vshrl.u32 %v175, 7
    %v177 = vsub.s32 1, %v176
    %v178 = vrot.slane %v169, %v177
    %v197 = vunpack.c.l.b16 %v153
    %v198 = vunpack.c.h.b16 %v153
    %v199 = vunpack.c.l.b16 %v154
    %v200 = vunpack.c.h.b16 %v154
    %v201 = vunpack.c.l.b16 %v155
    %v202 = vunpack.c.h.b16 %v155
    %v203 = vunpack.c.l.b16 %v156
    %v204 = vunpack.c.h.b16 %v156
    %v205 = vunpack.c.l.b16 %v157
    %v206 = vunpack.c.h.b16 %v157
    %v207 = vunpack.c.l.b16 %v158
    %v208 = vunpack.c.h.b16 %v158
    %v209 = vunpack.c.l.b16 %v159
    %v210 = vunpack.c.h.b16 %v159
    %v211 = vunpack.c.l.b16 %v160
    %v212 = vunpack.c.h.b16 %v160
    %v213 = vunpack.c.l.b16 %v161
    %v214 = vunpack.c.h.b16 %v161
    %v215 = vunpack.c.l.b16 %v162
    %v216 = vunpack.c.h.b16 %v162
    %v217 = vunpack.c.l.b16 %v163
    %v218 = vunpack.c.h.b16 %v163
    %v219 = vunpack.c.l.b16 %v164
    %v220 = vunpack.c.h.b16 %v164
    %v221 = vunpack.c.l.b16 %v165
    %v222 = vunpack.c.h.b16 %v165
    %v223 = vunpack.c.l.b16 %v166
    %v224 = vunpack.c.h.b16 %v166
    %v225 = vunpack.c.l.b16 %v167
    %v226 = vunpack.c.h.b16 %v167
    %v227 = vunpack.c.l.b16 %v168
    %v228 = vunpack.c.h.b16 %v168
    %v229 = vpack.c.b16 %v199, %v197
    %v230 = vpack.c.b16 %v200, %v198
    %v231 = vpack.c.b16 %v203, %v201
    %v232 = vpack.c.b16 %v204, %v202
    %v233 = vpack.c.b16 %v207, %v205
    %v234 = vpack.c.b16 %v208, %v206
    %v235 = vpack.c.b16 %v211, %v209
    %v236 = vpack.c.b16 %v212, %v210
    %v237 = vpack.c.b16 %v215, %v213
    %v238 = vpack.c.b16 %v216, %v214
    %v239 = vpack.c.b16 %v219, %v217
    %v240 = vpack.c.b16 %v220, %v218
    %v241 = vpack.c.b16 %v223, %v221
    %v242 = vpack.c.b16 %v224, %v222
    %v243 = vpack.c.b16 %v227, %v225
    %v244 = vpack.c.b16 %v228, %v226
    %261 = vmatprep.subr.bf16.mxu0 %v230
    %262 = vmatpush1.bf16.msra.mxu0 %v229
    %263 = vmatprep.subr.bf16.mxu0 %v232
    %264 = vmatpush1.bf16.msra.mxu0 %v231
    %265 = vmatprep.subr.bf16.mxu0 %v234
    %266 = vmatpush1.bf16.msra.mxu0 %v233
    %267 = vmatprep.subr.bf16.mxu0 %v236
    %268 = vmatpush1.bf16.msra.mxu0 %v235
    %269 = vmatprep.subr.bf16.mxu0 %v238
    %270 = vmatpush1.bf16.msra.mxu0 %v237
    %271 = vmatprep.subr.bf16.mxu0 %v240
    %272 = vmatpush1.bf16.msra.mxu0 %v239
    %273 = vmatprep.subr.bf16.mxu0 %v242
    %274 = vmatpush1.bf16.msra.mxu0 %v241
    %275 = vmatprep.subr.bf16.mxu0 %v244
    %276 = vmatpush1.bf16.msra.mxu0 %v243
    %277 = vmatprep.subr.bf16.mxu0 0
    %278 = vmatpush1.bf16.msra.mxu0 0
    %279 = vmatprep.subr.bf16.mxu0 0
    %280 = vmatpush1.bf16.msra.mxu0 0
    %281 = vmatprep.subr.bf16.mxu0 0
    %282 = vmatpush1.bf16.msra.mxu0 0
    %283 = vmatprep.subr.bf16.mxu0 0
    %284 = vmatpush1.bf16.msra.mxu0 0
    %285 = vmatprep.subr.bf16.mxu0 0
    %286 = vmatpush1.bf16.msra.mxu0 0
    %287 = vmatprep.subr.bf16.mxu0 0
    %288 = vmatpush1.bf16.msra.mxu0 0
    %289 = vmatprep.subr.bf16.mxu0 0
    %290 = vmatpush1.bf16.msra.mxu0 0
    %291 = vmatprep.subr.bf16.mxu0 0
    %292 = vmatpush1.bf16.msra.mxu0 0
    %293 = vmatprep.mubr.bf16.mxu0 0
    %294 = vmatmul.mubr.bf16.gmra.mrb[0].mxu0 %v152
    %v295 = vpop.f32.mrb[0].mxu0
    %v296 = vadd.f32 %v174, %v295
    %v297 = vpop.f32.mrb[0].mxu0
    %v298 = vadd.f32 %v178, %v297
    %v299 = vpop.f32.mrb[0].mxu0
    %v300 = vadd.f32 %v174, %v299
    %v301 = vpop.f32.mrb[0].mxu0
    %v302 = vadd.f32 %v178, %v301
    %303 = vdwg.mxu0
    %v304 = vtanh.pop %v296
    %v305 = vtanh.pop %v298
    %v306 = vtanh.pop %v300
    %v307 = vtanh.pop %v302
    %308 = vst [vmem:[#allocation5] sm:$0xff] %v304
    %309 = vst [vmem:[#allocation5 + $0x8] sm:$0xff] %v305
    %310 = vst [vmem:[#allocation5 + $0x10] sm:$0xff] %v306
    %311 = vst [vmem:[#allocation5 + $0x18] sm:$0xff] %v307
    // Predicated region
    $region30: #{tpu_custom_call.1} parent=1 // pred_check
      _
    $region31: #{tpu_custom_call.1} parent=1 // pred_check_branch
      %313 = sbr.rel (0) target = $region33
    $region32: #{tpu_custom_call.1} parent=1 // pred_region
      %s315 = ssub.s32 512, 512
      %316 = vsyncadd [#allocation4], %s315
      %s317 = sshll.u32 [#allocation5], 4
      %s318 = int_to_ptr.vmem [resolvable:$true] %s317
      %323 = dma.vmem_to_hbm [thread:$0]  %s318, 512, %s6, [#allocation4], 256, 256, 16
    $region33: #{tpu_custom_call.1} parent=1 // pred_fallthru
      _
    // Predicated region
    $region34: #{tpu_custom_call.1} parent=1 // pred_check
      _
    $region35: #{tpu_custom_call.1} parent=1 // pred_check_branch
      %325 = sbr.rel (0) target = $region37
    $region36: #{tpu_custom_call.1} parent=1 // pred_region
      %326 = dma.done [#allocation4], 512
    $region37: #{tpu_custom_call.1} parent=1 // pred_fallthru
      _
    %327 = vsyncpa [#allocation3], 1
    %328 = vsyncpa [#allocation4], 1

</llo_original>
